<compile_context>
chip_gen: v7x
topology: tpu7x:2x2x1
jax: 0.10.0
libtpu: 0.0.40
codegen_flags: <defaults>
</compile_context>

<pallas_src>
import functools

import jax
import jax.numpy as jnp
from jax.experimental import pallas as pl
from jax.experimental.pallas import tpu as pltpu


USE_PALLAS_BACKWARD = True

_LANE_CANDIDATES = (2048, 1024, 512, 256, 128)
_TARGET_BLOCK_BYTES = 6 * 1024 * 1024   # ~6 MiB tiles: amortizes per-step
                                         # overhead on v7x (3.2 TB/s) and v6e;
                                         # 4x (in+out double buffer) = 24 MiB.
_VMEM_LIMIT_BYTES = 48 * 1024 * 1024     # < v7x 64 MiB physical, < v5e/v6e 128 MiB.


# ---------------------------------------------------------------------------
# Pallas kernel: o = neg_lam * g   (elementwise, per row-tile, f32 math)
# ---------------------------------------------------------------------------
def _scale_kernel(neg_lam_ref, g_ref, o_ref):
    neg_lam = neg_lam_ref[0, 0]                              # SMEM f32 scalar
    # Multiply in f32 and cast only the result: avoids rounding lambda to
    # bf16/fp8 before the mul (up to ~0.4% scale error otherwise).
    o_ref[...] = (g_ref[...].astype(jnp.float32) * neg_lam).astype(o_ref.dtype)


def _neg_scale_pallas(g2d, neg_lam):
    """Tiled Pallas negate-scale of a lane-dense (rows, lane) slab."""
    rows, lane = g2d.shape
    dtype = g2d.dtype
    itemsize = jnp.dtype(dtype).itemsize

    # dtype-aware sublane multiple: keeps sub-32-bit blocks on full packed
    # sublanes (no masked partial-sublane stores in the last row group).
    sublane = max(8, 32 // itemsize)

    tile_rows = max(1, _TARGET_BLOCK_BYTES // (lane * itemsize))
    if tile_rows >= rows:
        tile_rows = rows                                   # full extent: legal
    else:
        tile_rows = max(sublane, (tile_rows // sublane) * sublane)
    grid = (pl.cdiv(rows, tile_rows),)

    neg_lam_arr = jnp.asarray(neg_lam, jnp.float32).reshape(1, 1)

    return pl.pallas_call(
        _scale_kernel,
        out_shape=jax.ShapeDtypeStruct((rows, lane), dtype),
        grid=grid,
        in_specs=[
            pl.BlockSpec(memory_space=pltpu.MemorySpace.SMEM),   # -lambda
            pl.BlockSpec((tile_rows, lane), lambda i: (i, 0)),   # grad tile
        ],
        out_specs=pl.BlockSpec((tile_rows, lane), lambda i: (i, 0)),
        # In-place negate-scale when the gradient buffer is donatable (it is
        # an intermediate inside a jitted training step); cuts peak HBM.
        input_output_aliases={1: 0},
        compiler_params=pltpu.CompilerParams(
            dimension_semantics=("parallel",),    # shard rows across TCs (v7x)
            vmem_limit_bytes=_VMEM_LIMIT_BYTES,
        ),
    )(neg_lam_arr, g2d)


@functools.partial(jax.jit, static_argnums=(1,))
def _neg_scale(g, lambda_):
    """Compute -lambda * g. Pallas on 128-aligned sizes, fused jnp otherwise."""
    shape, dtype, n = g.shape, g.dtype, g.size
    neg_lam = -float(lambda_)
    if n == 0:
        return g

    flat = g.reshape(-1)
    lane = next((c for c in _LANE_CANDIDATES if n % c == 0), None)
    if lane is None:
        # Ragged size: avoid the pad + slice HBM round-trip entirely and let
        # XLA fuse the plain elementwise scale.
        # TODO(synk): in-kernel masked store on the final 128-wide block.
        out = (flat.astype(jnp.float32) * jnp.float32(neg_lam)).astype(dtype)
        return out.reshape(shape)

    return _neg_scale_pallas(flat.reshape(-1, lane), neg_lam).reshape(shape)


# ---------------------------------------------------------------------------
# GradientReversal with custom VJP
# ---------------------------------------------------------------------------
@functools.partial(jax.custom_vjp, nondiff_argnums=(1,))
def gradient_reversal(x, lambda_=0.1):
    # Forward is the identity: JAX arrays are immutable, so no clone/copy
    # kernel is needed (saves the 2*N-byte HBM round-trip of torch's clone).
    return x


def _grl_fwd(x, lambda_):
    return x, None


def _grl_bwd(lambda_, _, g):
    if USE_PALLAS_BACKWARD:
        return (_neg_scale(g, lambda_),)
    # Fusion path: a bare jnp op lets XLA fold -lambda*g into the upstream
    # gradient producer -- no standalone HBM pass at all.
    return ((-lambda_) * g,)


gradient_reversal.defvjp(_grl_fwd, _grl_bwd)


class GradientReversal:
    """Mirror of the PyTorch module: forward is identity, grads are reversed."""

    def __init__(self, lambda_=0.1):
        self.lambda_ = float(lambda_)

    def __call__(self, x):
        return gradient_reversal(x, self.lambda_)


# ---------------------------------------------------------------------------
# Demo / smoke test
# ---------------------------------------------------------------------------
if __name__ == "__main__":
    grl = GradientReversal(lambda_=0.1)
    keys = jax.random.split(jax.random.PRNGKey(0), 8)

    # --- primary small NCHW case (2, 4, 16, 16), f32 -----------------------
    x = jax.random.normal(keys[0], (2, 4, 16, 16), jnp.float32)
    y = jax.block_until_ready(grl(x))
    assert y.shape == x.shape and y.dtype == x.dtype
    assert jnp.allclose(y, x), "forward must be identity"

    g = jax.random.normal(keys[1], x.shape, jnp.float32)
    _, vjp_fn = jax.vjp(grl, x)
    (dx,) = vjp_fn(g)
    dx = jax.block_until_ready(dx)
    assert jnp.allclose(dx, -0.1 * g, atol=1e-6), "backward must be -lambda*g"

    # --- larger case: exercises multi-block grid + partial last block ------
    x2 = jax.random.normal(keys[2], (8, 64, 64, 64), jnp.float32)
    g2 = jax.random.normal(keys[3], x2.shape, jnp.float32)
    _, vjp_fn2 = jax.vjp(grl, x2)
    (dx2,) = vjp_fn2(g2)
    dx2 = jax.block_until_ready(dx2)
    assert jnp.allclose(dx2, -0.1 * g2, atol=1e-6)

    # --- bf16 gradients: f32 math inside the kernel ------------------------
    x3 = jax.random.normal(keys[4], (2, 4, 16, 16), jnp.bfloat16)
    g3 = jax.random.normal(keys[5], x3.shape, jnp.bfloat16)
    _, vjp_fn3 = jax.vjp(grl, x3)
    (dx3,) = vjp_fn3(g3)
    dx3 = jax.block_until_ready(dx3)
    ref3 = (g3.astype(jnp.float32) * jnp.float32(-0.1)).astype(jnp.bfloat16)
    assert jnp.allclose(dx3.astype(jnp.float32), ref3.astype(jnp.float32),
                        atol=1e-2, rtol=1e-2)

    # --- ragged size (not a multiple of 128): fused plain-jnp path ---------
    x4 = jax.random.normal(keys[6], (3, 5, 7, 11), jnp.float32)
    g4 = jax.random.normal(keys[7], x4.shape, jnp.float32)
    _, vjp_fn4 = jax.vjp(grl, x4)
    (dx4,) = vjp_fn4(g4)
    dx4 = jax.block_until_ready(dx4)
    assert jnp.allclose(dx4, -0.1 * g4, atol=1e-6)

    print("KERNEL_OK")
</pallas_src>

<mosaic_0001>
module attributes {stable_mosaic.version = 11 : i64} {
  func.func @_scale_kernel(%arg0: i32, %arg1: memref<1x1xf32, #tpu.memory_space<smem>>, %arg2: memref<1x2048xf32, #tpu.memory_space<vmem>>, %arg3: memref<1x2048xf32, #tpu.memory_space<vmem>>) attributes {dimension_semantics = [#tpu.dimension_semantics<parallel>], iteration_bounds = array<i64: 1>, scalar_prefetch = 0 : i64, scratch_operands = 0 : i64, tpu.core_type = #tpu.core_type<tc>, window_params = [{transform_indices = @transform_0, window_bounds = array<i64: 1, 1>}, {transform_indices = @transform_1, window_bounds = array<i64: 1, 2048>}, {transform_indices = @transform_2, window_bounds = array<i64: 1, 2048>}]} {
    %c0 = arith.constant 0 : index
    %c0_0 = arith.constant 0 : index
    %0 = memref.load %arg1[%c0, %c0_0] : memref<1x1xf32, #tpu.memory_space<smem>>
    %c0_1 = arith.constant 0 : index
    %c0_2 = arith.constant 0 : index
    %1 = vector.load %arg2[%c0_1, %c0_2] : memref<1x2048xf32, #tpu.memory_space<vmem>>, vector<1x2048xf32>
    %2 = vector.broadcast %0 : f32 to vector<1x2048xf32>
    %3 = arith.mulf %1, %2 : vector<1x2048xf32>
    %c0_3 = arith.constant 0 : index
    %c0_4 = arith.constant 0 : index
    %4 = vector.load %arg3[%c0_3, %c0_4] : memref<1x2048xf32, #tpu.memory_space<vmem>>, vector<1x2048xf32>
    tpu.vector_store %arg3[%c0_3, %c0_4], %3 {strides = array<i32>} : memref<1x2048xf32, #tpu.memory_space<vmem>>, vector<1x2048xf32>,
    return
  }
  func.func @transform_0(%arg0: i32) -> (i32, i32) {
    %c0_i32 = arith.constant 0 : i32
    %c0_i32_0 = arith.constant 0 : i32
    %c0_i32_1 = arith.constant 0 : i32
    return %c0_i32, %c0_i32_0 : i32, i32
  }
  func.func @transform_1(%arg0: i32) -> (i32, i32) {
    %c0_i32 = arith.constant 0 : i32
    %c0_i32_0 = arith.constant 0 : i32
    return %arg0, %c0_i32 : i32, i32
  }
  func.func @transform_2(%arg0: i32) -> (i32, i32) {
    %c0_i32 = arith.constant 0 : i32
    %c0_i32_0 = arith.constant 0 : i32
    return %arg0, %c0_i32 : i32, i32
  }
}

</mosaic_0001>

<llo_original>
// kernel: _neg_scale.1
$region0: #{_neg_scale.1}
  #allocation0 [shape = 'u32[]', space=smem, size = 0x4, offset = 0x4, fixed_abs, tag = 'smem constant byte address 0x4 - core index']
  #allocation1 [shape = 'u32[144,128]{1,0:T(1,128)}', space=vmem, size = 0x12000, scoped, tag = 'internal scratch']
  #allocation2 [shape = 'f32[1,1]{1,0:T(1,128)S(6)}', space=smem, size = 0x200, scoped, tag = 'scoped memory for _neg_scale.1']
  %s0 = inlined_call_operand.<no memory space> [shape: f32[1,1], index: 0, kind: input, shape index: {}]
  %s1 = inlined_call_operand.vmem [shape: f32[1,2048], index: 1, kind: input, shape index: {}, may-alias: {1,2}]
  %s2 = inlined_call_operand.vmem [shape: f32[1,2048], index: 2, kind: output, shape index: {}, may-alias: {1,2}]
  %s3 = sld [smem:[#allocation0]]
  $region18: #{_neg_scale.1} parent=0
    _
  %s5 = ssub.s32 1, %s3
  %s6 = scalar_select 0, %s5, %s3
  %7 = sst [smem:[#allocation2]] %s0
  // Predicated region
  $region2: #{_neg_scale.1} parent=0 // pred_check
    _
  $region3: #{_neg_scale.1} parent=0 // pred_check_branch
    %9 = sbr.rel (0) target = $region5
  $region4: #{_neg_scale.1} parent=0 // pred_region
    _
  $region5: #{_neg_scale.1} parent=0 // pred_fallthru
    _
  // Predicated region
  $region6: #{_neg_scale.1} parent=0 // pred_check
    _
  $region7: #{_neg_scale.1} parent=0 // pred_check_branch
    %11 = sbr.rel (0) target = $region9
  $region8: #{_neg_scale.1} parent=0 // pred_region
    _
  $region9: #{_neg_scale.1} parent=0 // pred_fallthru
    _
  %s12 = sld [smem:[#allocation2]]
  %v13 = vld [vmem:[%s1] sm:$0xff]
  %v14 = vld [vmem:[%s1 + $0x8] sm:$0xff]
  %v15 = vstv %s12
  %v16 = vmul.f32 %v13, %v15
  %v17 = vmul.f32 %v14, %v15
  %18 = vst [vmem:[%s2] sm:$0xff] %v16
  %19 = vst [vmem:[%s2 + $0x8] sm:$0xff] %v17
  // Predicated region
  $region10: #{_neg_scale.1} parent=0 // pred_check
    _
  $region11: #{_neg_scale.1} parent=0 // pred_check_branch
    %21 = sbr.rel (0) target = $region13
  $region12: #{_neg_scale.1} parent=0 // pred_region
    _
  $region13: #{_neg_scale.1} parent=0 // pred_fallthru
    _
  // Predicated region
  $region14: #{_neg_scale.1} parent=0 // pred_check
    _
  $region15: #{_neg_scale.1} parent=0 // pred_check_branch
    %23 = sbr.rel (0) target = $region17
  $region16: #{_neg_scale.1} parent=0 // pred_region
    _
  $region17: #{_neg_scale.1} parent=0 // pred_fallthru
    _

</llo_original>
